<compile_context>
chip_gen: v5e
topology: v5e:2x2
jax: 0.10.0
libtpu: 0.0.40
codegen_flags: <defaults>
</compile_context>

<pallas_src>
import functools

import jax
import jax.numpy as jnp
from jax.experimental import pallas as pl
from jax.experimental.pallas import tpu as pltpu


def _cam_kernel(x_ref, w_ref, b_ref, o_ref, sum_acc, max_acc, *,
                hw, t_hw, lane_w, n_cols, needs_mask, inv_hw):
    """Process one (C, t_hw) tile of one batch element.

    x_ref:   (C, t_hw)    input tile, H*W on lanes
    w_ref:   (C, 2C)      fuse weight (Conv2d(2C, C, 1) weight squeezed)
    b_ref:   (C, 1)       fuse bias
    o_ref:   (C, 1)       output column for this batch element
    sum_acc: (C, lane_w)  f32 running lane-wide sum   (scratch)
    max_acc: (C, lane_w)  f32 running lane-wide max   (scratch)
    """
    k = pl.program_id(1)

    @pl.when(k == 0)
    def _():
        sum_acc[...] = jnp.zeros_like(sum_acc)
        max_acc[...] = jnp.full_like(max_acc, -jnp.inf)

    base = k * t_hw
    # Elementwise VPU add/max per 128-lane column slice; the cross-lane reduction
    # is deferred to the epilogue.  Static Python unroll (n_cols is capped small).
    for j in range(n_cols):
        xs = x_ref[:, j * lane_w:(j + 1) * lane_w].astype(jnp.float32)
        if needs_mask:
            lane = jax.lax.broadcasted_iota(jnp.int32, xs.shape, 1)
            valid = lane < (hw - base - j * lane_w)      # stale lanes of the
            sum_acc[...] += jnp.where(valid, xs, 0.0)    # partial last tile are
            max_acc[...] = jnp.maximum(max_acc[...],     # masked out
                                       jnp.where(valid, xs, -jnp.inf))
        else:
            sum_acc[...] += xs
            max_acc[...] = jnp.maximum(max_acc[...], xs)

    @pl.when(k == pl.num_programs(1) - 1)
    def _():
        # Single cross-lane reduce per batch element (epilogue only).
        mean_col = jnp.sum(sum_acc[...], axis=-1, keepdims=True) * inv_hw   # (C, 1)
        max_col = jnp.max(max_acc[...], axis=-1, keepdims=True)             # (C, 1)
        pooled = jnp.concatenate([mean_col, max_col], axis=0)               # (2C, 1)
        w = w_ref[...].astype(jnp.float32)                                  # (C, 2C)
        # 1x1 conv == canonical (C,2C)@(2C,1) matmul -> MXU (otherwise idle slot).
        fused = jnp.dot(w, pooled, preferred_element_type=jnp.float32)      # (C, 1)
        fused = fused + b_ref[...].astype(jnp.float32)
        o_ref[...] = fused.astype(o_ref.dtype)


def _choose_hw_tile(hw, c, itemsize, max_tile_bytes, max_cols=32):
    """Return (t_hw, lane_w, n_cols) with t_hw = n_cols * lane_w.

    lane_w is 128 whenever hw >= 128 (lane-dense slices); t_hw never exceeds hw,
    so ragged H*W is handled by in-kernel masking of the cdiv last tile rather
    than a giant whole-row block.
    """
    if hw <= 128:
        return hw, hw, 1
    cols_budget = max(1, max_tile_bytes // (c * 128 * itemsize))
    cols_hw = hw // 128
    n_cols = max(1, min(cols_budget, cols_hw, max_cols))
    return n_cols * 128, 128, n_cols


def cam_forward(x, weight, bias, *, max_tile_bytes=4 * 1024 * 1024):
    """CAM forward. x: (B, C, H, W); weight: (C, 2C, 1, 1); bias: (C,) -> (B, C, 1, 1)."""
    b, c, h, w = x.shape
    hw = h * w
    itemsize = x.dtype.itemsize

    x3 = x.reshape(b, c, hw)           # free reshape of NCHW (no transpose)
    w2 = weight.reshape(c, 2 * c)      # native (C_out, 2C_in) orientation
    b2 = bias.reshape(c, 1)

    t_hw, lane_w, n_cols = _choose_hw_tile(hw, c, itemsize, max_tile_bytes)
    n_hw = pl.cdiv(hw, t_hw)
    needs_mask = (hw % t_hw) != 0
    x_bufs = 3 if n_hw >= 3 else 2     # deeper x pipeline only when it can help

    kernel = functools.partial(
        _cam_kernel, hw=hw, t_hw=t_hw, lane_w=lane_w, n_cols=n_cols,
        needs_mask=needs_mask, inv_hw=1.0 / float(hw))

    cost = pl.CostEstimate(
        flops=2 * b * c * hw + 2 * b * c * (2 * c),
        transcendentals=0,
        bytes_accessed=(x3.size * itemsize + w2.size * w2.dtype.itemsize
                        + b2.size * b2.dtype.itemsize + b * c * itemsize),
    )

    # Raise the scoped-VMEM limit only if the footprint may exceed the defaults
    # (16 MiB on v5e, 32 MiB on v6e/v7x); stay under v7x's 64 MiB physical VMEM.
    tile_bytes = c * t_hw * itemsize
    need = (x_bufs * tile_bytes                 # pipelined x tiles
            + 2 * c * c * itemsize              # weight (single-buffered)
            + c * itemsize                      # bias
            + 2 * c * lane_w * 4                # f32 scratch accumulators
            + 2 * c * 4)                        # output block
    compiler_kwargs = dict(dimension_semantics=("parallel", "arbitrary"))
    if need > 12 * 1024 * 1024:
        compiler_kwargs["vmem_limit_bytes"] = min(
            int(need * 1.5) + (2 << 20), 64 * 1024 * 1024)

    def build(use_pipeline_mode):
        def in_spec(shape, index_map, bufs):
            if use_pipeline_mode:
                return pl.BlockSpec(shape, index_map, pipeline_mode=pl.Buffered(bufs))
            return pl.BlockSpec(shape, index_map)

        grid_spec = pltpu.PrefetchScalarGridSpec(
            num_scalar_prefetch=0,
            grid=(b, n_hw),                     # batch parallel, H*W reduction last
            in_specs=[
                in_spec((None, c, t_hw), lambda bi, ki: (bi, 0, ki), x_bufs),
                in_spec((c, 2 * c), lambda bi, ki: (0, 0), 1),  # constant -> 1 buffer
                in_spec((c, 1), lambda bi, ki: (0, 0), 1),      # constant -> 1 buffer
            ],
            out_specs=pl.BlockSpec((None, c, 1), lambda bi, ki: (bi, 0, 0)),
            scratch_shapes=[pltpu.VMEM((c, lane_w), jnp.float32),
                            pltpu.VMEM((c, lane_w), jnp.float32)],
        )
        return pl.pallas_call(
            kernel,
            out_shape=jax.ShapeDtypeStruct((b, c, 1), x.dtype),
            grid_spec=grid_spec,
            compiler_params=pltpu.CompilerParams(**compiler_kwargs),
            cost_estimate=cost,
        )

    try:
        out = build(True)(x3, w2, b2)
    except Exception:
        # Compatibility fallback: pipeline_mode=pl.Buffered(...) unavailable on this
        # jax build; default double-buffering only costs extra VMEM at large C.
        out = build(False)(x3, w2, b2)

    return out.reshape(b, c, 1, 1)


def _cam_reference(x, weight, bias):
    b, c = x.shape[0], x.shape[1]
    avg = jnp.mean(x, axis=(2, 3))
    mx = jnp.max(x, axis=(2, 3))
    cat = jnp.concatenate([avg, mx], axis=1)
    out = jnp.einsum("oi,bi->bo", weight.reshape(c, 2 * c), cat) + bias
    return out.reshape(b, c, 1, 1)


if __name__ == "__main__":
    key = jax.random.PRNGKey(0)

    # (B, C, H, W): full-tile path, masked ragged-H*W path, tiny H*W (<128) path.
    shapes = [(2, 4, 16, 16), (2, 8, 11, 13), (2, 4, 5, 6)]
    for (B, C, H, W) in shapes:
        kx, kw, kb, key = jax.random.split(key, 4)
        x = jax.random.normal(kx, (B, C, H, W), dtype=jnp.float32)
        weight = 0.1 * jax.random.normal(kw, (C, 2 * C, 1, 1), dtype=jnp.float32)
        bias = 0.1 * jax.random.normal(kb, (C,), dtype=jnp.float32)

        out = jax.block_until_ready(cam_forward(x, weight, bias))
        ref = _cam_reference(x, weight, bias)

        assert out.shape == (B, C, 1, 1)
        err = float(jnp.max(jnp.abs(out - ref)))
        assert err < 2e-3, f"shape {(B, C, H, W)}: max abs err {err}"

    print("KERNEL_OK")
</pallas_src>

<mosaic_0001>
module attributes {stable_mosaic.version = 11 : i64} {
  func.func @_cam_kernel(%arg0: i32, %arg1: i32, %arg2: memref<1x4x256xf32, #tpu.memory_space<vmem>>, %arg3: memref<4x8xf32, #tpu.memory_space<vmem>>, %arg4: memref<4x1xf32, #tpu.memory_space<vmem>>, %arg5: memref<1x4x1xf32, #tpu.memory_space<vmem>>, %arg6: memref<4x128xf32, #tpu.memory_space<vmem>>, %arg7: memref<4x128xf32, #tpu.memory_space<vmem>>) attributes {dimension_semantics = [#tpu.dimension_semantics<parallel>, #tpu.dimension_semantics<arbitrary>], iteration_bounds = array<i64: 2, 1>, scalar_prefetch = 0 : i64, scratch_operands = 2 : i64, tpu.core_type = #tpu.core_type<tc>, window_params = [{pipeline_mode = #tpu.pipeline_mode<double_buffered>, transform_indices = @transform_0, window_bounds = array<i64: 1, 4, 256>}, {pipeline_mode = #tpu.pipeline_mode<synchronous>, transform_indices = @transform_1, window_bounds = array<i64: 4, 8>}, {pipeline_mode = #tpu.pipeline_mode<synchronous>, transform_indices = @transform_2, window_bounds = array<i64: 4, 1>}, {transform_indices = @transform_3, window_bounds = array<i64: 1, 4, 1>}]} {
    %c0_i32 = arith.constant 0 : i32
    %0 = arith.cmpi eq, %arg1, %c0_i32 : i32
    %1 = arith.extui %0 : i1 to i32
    %c0_i32_0 = arith.constant 0 : i32
    %2 = arith.cmpi ne, %1, %c0_i32_0 : i32
    scf.if %2 {
      %cst = arith.constant 0.000000e+00 : f32
      %22 = vector.broadcast %cst : f32 to vector<4x128xf32>
      %c0_23 = arith.constant 0 : index
      %c0_24 = arith.constant 0 : index
      %23 = vector.load %arg6[%c0_23, %c0_24] : memref<4x128xf32, #tpu.memory_space<vmem>>, vector<4x128xf32>
      tpu.vector_store %arg6[%c0_23, %c0_24], %22 {strides = array<i32>} : memref<4x128xf32, #tpu.memory_space<vmem>>, vector<4x128xf32>,
      %cst_25 = arith.constant 0xFF800000 : f32
      %24 = vector.broadcast %cst_25 : f32 to vector<4x128xf32>
      %c0_26 = arith.constant 0 : index
      %c0_27 = arith.constant 0 : index
      %25 = vector.load %arg7[%c0_26, %c0_27] : memref<4x128xf32, #tpu.memory_space<vmem>>, vector<4x128xf32>
      tpu.vector_store %arg7[%c0_26, %c0_27], %24 {strides = array<i32>} : memref<4x128xf32, #tpu.memory_space<vmem>>, vector<4x128xf32>,
    } else {
    }
    %c0 = arith.constant 0 : index
    %c0_1 = arith.constant 0 : index
    %c0_2 = arith.constant 0 : index
    %3 = vector.load %arg2[%c0, %c0_1, %c0_2] : memref<1x4x256xf32, #tpu.memory_space<vmem>>, vector<1x4x128xf32>
    %4 = vector.shape_cast %3 : vector<1x4x128xf32> to vector<4x128xf32>
    %c0_3 = arith.constant 0 : index
    %c0_4 = arith.constant 0 : index
    %5 = vector.load %arg6[%c0_3, %c0_4] : memref<4x128xf32, #tpu.memory_space<vmem>>, vector<4x128xf32>
    %6 = arith.addf %5, %4 : vector<4x128xf32>
    %c0_5 = arith.constant 0 : index
    %c0_6 = arith.constant 0 : index
    %7 = vector.load %arg6[%c0_5, %c0_6] : memref<4x128xf32, #tpu.memory_space<vmem>>, vector<4x128xf32>
    tpu.vector_store %arg6[%c0_5, %c0_6], %6 {strides = array<i32>} : memref<4x128xf32, #tpu.memory_space<vmem>>, vector<4x128xf32>,
    %c0_7 = arith.constant 0 : index
    %c0_8 = arith.constant 0 : index
    %8 = vector.load %arg7[%c0_7, %c0_8] : memref<4x128xf32, #tpu.memory_space<vmem>>, vector<4x128xf32>
    %9 = arith.maximumf %8, %4 : vector<4x128xf32>
    %c0_9 = arith.constant 0 : index
    %c0_10 = arith.constant 0 : index
    %10 = vector.load %arg7[%c0_9, %c0_10] : memref<4x128xf32, #tpu.memory_space<vmem>>, vector<4x128xf32>
    tpu.vector_store %arg7[%c0_9, %c0_10], %9 {strides = array<i32>} : memref<4x128xf32, #tpu.memory_space<vmem>>, vector<4x128xf32>,
    %c0_11 = arith.constant 0 : index
    %c0_12 = arith.constant 0 : index
    %c128 = arith.constant 128 : index
    %11 = vector.load %arg2[%c0_11, %c0_12, %c128] : memref<1x4x256xf32, #tpu.memory_space<vmem>>, vector<1x4x128xf32>
    %12 = vector.shape_cast %11 : vector<1x4x128xf32> to vector<4x128xf32>
    %c0_13 = arith.constant 0 : index
    %c0_14 = arith.constant 0 : index
    %13 = vector.load %arg6[%c0_13, %c0_14] : memref<4x128xf32, #tpu.memory_space<vmem>>, vector<4x128xf32>
    %14 = arith.addf %13, %12 : vector<4x128xf32>
    %c0_15 = arith.constant 0 : index
    %c0_16 = arith.constant 0 : index
    %15 = vector.load %arg6[%c0_15, %c0_16] : memref<4x128xf32, #tpu.memory_space<vmem>>, vector<4x128xf32>
    tpu.vector_store %arg6[%c0_15, %c0_16], %14 {strides = array<i32>} : memref<4x128xf32, #tpu.memory_space<vmem>>, vector<4x128xf32>,
    %c0_17 = arith.constant 0 : index
    %c0_18 = arith.constant 0 : index
    %16 = vector.load %arg7[%c0_17, %c0_18] : memref<4x128xf32, #tpu.memory_space<vmem>>, vector<4x128xf32>
    %17 = arith.maximumf %16, %12 : vector<4x128xf32>
    %c0_19 = arith.constant 0 : index
    %c0_20 = arith.constant 0 : index
    %18 = vector.load %arg7[%c0_19, %c0_20] : memref<4x128xf32, #tpu.memory_space<vmem>>, vector<4x128xf32>
    tpu.vector_store %arg7[%c0_19, %c0_20], %17 {strides = array<i32>} : memref<4x128xf32, #tpu.memory_space<vmem>>, vector<4x128xf32>,
    %c0_i32_21 = arith.constant 0 : i32
    %19 = arith.cmpi eq, %arg1, %c0_i32_21 : i32
    %20 = arith.extui %19 : i1 to i32
    %c0_i32_22 = arith.constant 0 : i32
    %21 = arith.cmpi ne, %20, %c0_i32_22 : i32
    scf.if %21 {
      %c0_23 = arith.constant 0 : index
      %c0_24 = arith.constant 0 : index
      %22 = vector.load %arg6[%c0_23, %c0_24] : memref<4x128xf32, #tpu.memory_space<vmem>>, vector<4x128xf32>
      %cst = arith.constant dense<0.000000e+00> : vector<4xf32>
      %23 = vector.multi_reduction <add>, %22, %cst [1] : vector<4x128xf32> to vector<4xf32>
      %24 = vector.shape_cast %23 : vector<4xf32> to vector<4x1xf32>
      %cst_25 = arith.constant 3.906250e-03 : f32
      %25 = vector.broadcast %cst_25 : f32 to vector<4x1xf32>
      %26 = arith.mulf %24, %25 : vector<4x1xf32>
      %c0_26 = arith.constant 0 : index
      %c0_27 = arith.constant 0 : index
      %27 = vector.load %arg7[%c0_26, %c0_27] : memref<4x128xf32, #tpu.memory_space<vmem>>, vector<4x128xf32>
      %cst_28 = arith.constant dense<0xFF800000> : vector<4xf32>
      %28 = vector.multi_reduction <maximumf>, %27, %cst_28 [1] : vector<4x128xf32> to vector<4xf32>
      %29 = vector.shape_cast %28 : vector<4xf32> to vector<4x1xf32>
      %30 = tpu.concatenate %26, %29 in 0 : vector<4x1xf32>, vector<4x1xf32> -> vector<8x1xf32>
      %c0_29 = arith.constant 0 : index
      %c0_30 = arith.constant 0 : index
      %31 = vector.load %arg3[%c0_29, %c0_30] : memref<4x8xf32, #tpu.memory_space<vmem>>, vector<4x8xf32>
      %cst_31 = arith.constant dense<0.000000e+00> : vector<4x1xf32>
      %32 = tpu.matmul %31, %30, %cst_31 {dimension_numbers = #tpu.dot_dimension_numbers<[1], [0], [0], [1], [0, 0, 1, 1], [], []>} : vector<4x8xf32>, vector<8x1xf32>, vector<4x1xf32> -> vector<4x1xf32>
      %c0_32 = arith.constant 0 : index
      %c0_33 = arith.constant 0 : index
      %33 = vector.load %arg4[%c0_32, %c0_33] : memref<4x1xf32, #tpu.memory_space<vmem>>, vector<4x1xf32>
      %34 = arith.addf %32, %33 : vector<4x1xf32>
      %c0_34 = arith.constant 0 : index
      %c0_35 = arith.constant 0 : index
      %c0_36 = arith.constant 0 : index
      %35 = vector.load %arg5[%c0_34, %c0_35, %c0_36] : memref<1x4x1xf32, #tpu.memory_space<vmem>>, vector<1x4x1xf32>
      %36 = vector.shape_cast %35 : vector<1x4x1xf32> to vector<4x1xf32>
      %37 = vector.shape_cast %34 : vector<4x1xf32> to vector<1x4x1xf32>
      tpu.vector_store %arg5[%c0_34, %c0_35, %c0_36], %37 {strides = array<i32>} : memref<1x4x1xf32, #tpu.memory_space<vmem>>, vector<1x4x1xf32>,
    } else {
    }
    return
  }
  func.func @transform_0(%arg0: i32, %arg1: i32) -> (i32, i32, i32) {
    %c0_i32 = arith.constant 0 : i32
    %c0_i32_0 = arith.constant 0 : i32
    return %arg0, %c0_i32, %arg1 : i32, i32, i32
  }
  func.func @transform_1(%arg0: i32, %arg1: i32) -> (i32, i32) {
    %c0_i32 = arith.constant 0 : i32
    %c0_i32_0 = arith.constant 0 : i32
    %c0_i32_1 = arith.constant 0 : i32
    return %c0_i32, %c0_i32_0 : i32, i32
  }
  func.func @transform_2(%arg0: i32, %arg1: i32) -> (i32, i32) {
    %c0_i32 = arith.constant 0 : i32
    %c0_i32_0 = arith.constant 0 : i32
    %c0_i32_1 = arith.constant 0 : i32
    return %c0_i32, %c0_i32_0 : i32, i32
  }
  func.func @transform_3(%arg0: i32, %arg1: i32) -> (i32, i32, i32) {
    %c0_i32 = arith.constant 0 : i32
    %c0_i32_0 = arith.constant 0 : i32
    %c0_i32_1 = arith.constant 0 : i32
    return %arg0, %c0_i32, %c0_i32_0 : i32, i32, i32
  }
}

module attributes {stable_mosaic.version = 11 : i64} {
  func.func @_cam_kernel(%arg0: i32, %arg1: i32, %arg2: memref<1x4x256xf32, #tpu.memory_space<vmem>>, %arg3: memref<4x8xf32, #tpu.memory_space<vmem>>, %arg4: memref<4x1xf32, #tpu.memory_space<vmem>>, %arg5: memref<1x4x1xf32, #tpu.memory_space<vmem>>, %arg6: memref<4x128xf32, #tpu.memory_space<vmem>>, %arg7: memref<4x128xf32, #tpu.memory_space<vmem>>) attributes {dimension_semantics = [#tpu.dimension_semantics<parallel>, #tpu.dimension_semantics<arbitrary>], iteration_bounds = array<i64: 2, 1>, scalar_prefetch = 0 : i64, scratch_operands = 2 : i64, tpu.core_type = #tpu.core_type<tc>, window_params = [{transform_indices = @transform_0, window_bounds = array<i64: 1, 4, 256>}, {pipeline_mode = #tpu.pipeline_mode<synchronous>, transform_indices = @transform_1, window_bounds = array<i64: 4, 8>}, {pipeline_mode = #tpu.pipeline_mode<synchronous>, transform_indices = @transform_2, window_bounds = array<i64: 4, 1>}, {transform_indices = @transform_3, window_bounds = array<i64: 1, 4, 1>}]} {
    %c0_i32 = arith.constant 0 : i32
    %0 = arith.cmpi eq, %arg1, %c0_i32 : i32
    %1 = arith.extui %0 : i1 to i32
    %c0_i32_0 = arith.constant 0 : i32
    %2 = arith.cmpi ne, %1, %c0_i32_0 : i32
    scf.if %2 {
      %cst = arith.constant 0.000000e+00 : f32
      %22 = vector.broadcast %cst : f32 to vector<4x128xf32>
      %c0_23 = arith.constant 0 : index
      %c0_24 = arith.constant 0 : index
      %23 = vector.load %arg6[%c0_23, %c0_24] : memref<4x128xf32, #tpu.memory_space<vmem>>, vector<4x128xf32>
      tpu.vector_store %arg6[%c0_23, %c0_24], %22 {strides = array<i32>} : memref<4x128xf32, #tpu.memory_space<vmem>>, vector<4x128xf32>,
      %cst_25 = arith.constant 0xFF800000 : f32
      %24 = vector.broadcast %cst_25 : f32 to vector<4x128xf32>
      %c0_26 = arith.constant 0 : index
      %c0_27 = arith.constant 0 : index
      %25 = vector.load %arg7[%c0_26, %c0_27] : memref<4x128xf32, #tpu.memory_space<vmem>>, vector<4x128xf32>
      tpu.vector_store %arg7[%c0_26, %c0_27], %24 {strides = array<i32>} : memref<4x128xf32, #tpu.memory_space<vmem>>, vector<4x128xf32>,
    } else {
    }
    %c0 = arith.constant 0 : index
    %c0_1 = arith.constant 0 : index
    %c0_2 = arith.constant 0 : index
    %3 = vector.load %arg2[%c0, %c0_1, %c0_2] : memref<1x4x256xf32, #tpu.memory_space<vmem>>, vector<1x4x128xf32>
    %4 = vector.shape_cast %3 : vector<1x4x128xf32> to vector<4x128xf32>
    %c0_3 = arith.constant 0 : index
    %c0_4 = arith.constant 0 : index
    %5 = vector.load %arg6[%c0_3, %c0_4] : memref<4x128xf32, #tpu.memory_space<vmem>>, vector<4x128xf32>
    %6 = arith.addf %5, %4 : vector<4x128xf32>
    %c0_5 = arith.constant 0 : index
    %c0_6 = arith.constant 0 : index
    %7 = vector.load %arg6[%c0_5, %c0_6] : memref<4x128xf32, #tpu.memory_space<vmem>>, vector<4x128xf32>
    tpu.vector_store %arg6[%c0_5, %c0_6], %6 {strides = array<i32>} : memref<4x128xf32, #tpu.memory_space<vmem>>, vector<4x128xf32>,
    %c0_7 = arith.constant 0 : index
    %c0_8 = arith.constant 0 : index
    %8 = vector.load %arg7[%c0_7, %c0_8] : memref<4x128xf32, #tpu.memory_space<vmem>>, vector<4x128xf32>
    %9 = arith.maximumf %8, %4 : vector<4x128xf32>
    %c0_9 = arith.constant 0 : index
    %c0_10 = arith.constant 0 : index
    %10 = vector.load %arg7[%c0_9, %c0_10] : memref<4x128xf32, #tpu.memory_space<vmem>>, vector<4x128xf32>
    tpu.vector_store %arg7[%c0_9, %c0_10], %9 {strides = array<i32>} : memref<4x128xf32, #tpu.memory_space<vmem>>, vector<4x128xf32>,
    %c0_11 = arith.constant 0 : index
    %c0_12 = arith.constant 0 : index
    %c128 = arith.constant 128 : index
    %11 = vector.load %arg2[%c0_11, %c0_12, %c128] : memref<1x4x256xf32, #tpu.memory_space<vmem>>, vector<1x4x128xf32>
    %12 = vector.shape_cast %11 : vector<1x4x128xf32> to vector<4x128xf32>
    %c0_13 = arith.constant 0 : index
    %c0_14 = arith.constant 0 : index
    %13 = vector.load %arg6[%c0_13, %c0_14] : memref<4x128xf32, #tpu.memory_space<vmem>>, vector<4x128xf32>
    %14 = arith.addf %13, %12 : vector<4x128xf32>
    %c0_15 = arith.constant 0 : index
    %c0_16 = arith.constant 0 : index
    %15 = vector.load %arg6[%c0_15, %c0_16] : memref<4x128xf32, #tpu.memory_space<vmem>>, vector<4x128xf32>
    tpu.vector_store %arg6[%c0_15, %c0_16], %14 {strides = array<i32>} : memref<4x128xf32, #tpu.memory_space<vmem>>, vector<4x128xf32>,
    %c0_17 = arith.constant 0 : index
    %c0_18 = arith.constant 0 : index
    %16 = vector.load %arg7[%c0_17, %c0_18] : memref<4x128xf32, #tpu.memory_space<vmem>>, vector<4x128xf32>
    %17 = arith.maximumf %16, %12 : vector<4x128xf32>
    %c0_19 = arith.constant 0 : index
    %c0_20 = arith.constant 0 : index
    %18 = vector.load %arg7[%c0_19, %c0_20] : memref<4x128xf32, #tpu.memory_space<vmem>>, vector<4x128xf32>
    tpu.vector_store %arg7[%c0_19, %c0_20], %17 {strides = array<i32>} : memref<4x128xf32, #tpu.memory_space<vmem>>, vector<4x128xf32>,
    %c0_i32_21 = arith.constant 0 : i32
    %19 = arith.cmpi eq, %arg1, %c0_i32_21 : i32
    %20 = arith.extui %19 : i1 to i32
    %c0_i32_22 = arith.constant 0 : i32
    %21 = arith.cmpi ne, %20, %c0_i32_22 : i32
    scf.if %21 {
      %c0_23 = arith.constant 0 : index
      %c0_24 = arith.constant 0 : index
      %22 = vector.load %arg6[%c0_23, %c0_24] : memref<4x128xf32, #tpu.memory_space<vmem>>, vector<4x128xf32>
      %cst = arith.constant dense<0.000000e+00> : vector<4xf32>
      %23 = vector.multi_reduction <add>, %22, %cst [1] : vector<4x128xf32> to vector<4xf32>
      %24 = vector.shape_cast %23 : vector<4xf32> to vector<4x1xf32>
      %cst_25 = arith.constant 3.906250e-03 : f32
      %25 = vector.broadcast %cst_25 : f32 to vector<4x1xf32>
      %26 = arith.mulf %24, %25 : vector<4x1xf32>
      %c0_26 = arith.constant 0 : index
      %c0_27 = arith.constant 0 : index
      %27 = vector.load %arg7[%c0_26, %c0_27] : memref<4x128xf32, #tpu.memory_space<vmem>>, vector<4x128xf32>
      %cst_28 = arith.constant dense<0xFF800000> : vector<4xf32>
      %28 = vector.multi_reduction <maximumf>, %27, %cst_28 [1] : vector<4x128xf32> to vector<4xf32>
      %29 = vector.shape_cast %28 : vector<4xf32> to vector<4x1xf32>
      %30 = tpu.concatenate %26, %29 in 0 : vector<4x1xf32>, vector<4x1xf32> -> vector<8x1xf32>
      %c0_29 = arith.constant 0 : index
      %c0_30 = arith.constant 0 : index
      %31 = vector.load %arg3[%c0_29, %c0_30] : memref<4x8xf32, #tpu.memory_space<vmem>>, vector<4x8xf32>
      %cst_31 = arith.constant dense<0.000000e+00> : vector<4x1xf32>
      %32 = tpu.matmul %31, %30, %cst_31 {dimension_numbers = #tpu.dot_dimension_numbers<[1], [0], [0], [1], [0, 0, 1, 1], [], []>} : vector<4x8xf32>, vector<8x1xf32>, vector<4x1xf32> -> vector<4x1xf32>
      %c0_32 = arith.constant 0 : index
      %c0_33 = arith.constant 0 : index
      %33 = vector.load %arg4[%c0_32, %c0_33] : memref<4x1xf32, #tpu.memory_space<vmem>>, vector<4x1xf32>
      %34 = arith.addf %32, %33 : vector<4x1xf32>
      %c0_34 = arith.constant 0 : index
      %c0_35 = arith.constant 0 : index
      %c0_36 = arith.constant 0 : index
      %35 = vector.load %arg5[%c0_34, %c0_35, %c0_36] : memref<1x4x1xf32, #tpu.memory_space<vmem>>, vector<1x4x1xf32>
      %36 = vector.shape_cast %35 : vector<1x4x1xf32> to vector<4x1xf32>
      %37 = vector.shape_cast %34 : vector<4x1xf32> to vector<1x4x1xf32>
      tpu.vector_store %arg5[%c0_34, %c0_35, %c0_36], %37 {strides = array<i32>} : memref<1x4x1xf32, #tpu.memory_space<vmem>>, vector<1x4x1xf32>,
    } else {
    }
    return
  }
  func.func @transform_0(%arg0: i32, %arg1: i32) -> (i32, i32, i32) {
    %c0_i32 = arith.constant 0 : i32
    %c0_i32_0 = arith.constant 0 : i32
    return %arg0, %c0_i32, %arg1 : i32, i32, i32
  }
  func.func @transform_1(%arg0: i32, %arg1: i32) -> (i32, i32) {
    %c0_i32 = arith.constant 0 : i32
    %c0_i32_0 = arith.constant 0 : i32
    %c0_i32_1 = arith.constant 0 : i32
    return %c0_i32, %c0_i32_0 : i32, i32
  }
  func.func @transform_2(%arg0: i32, %arg1: i32) -> (i32, i32) {
    %c0_i32 = arith.constant 0 : i32
    %c0_i32_0 = arith.constant 0 : i32
    %c0_i32_1 = arith.constant 0 : i32
    return %c0_i32, %c0_i32_0 : i32, i32
  }
  func.func @transform_3(%arg0: i32, %arg1: i32) -> (i32, i32, i32) {
    %c0_i32 = arith.constant 0 : i32
    %c0_i32_0 = arith.constant 0 : i32
    %c0_i32_1 = arith.constant 0 : i32
    return %arg0, %c0_i32, %c0_i32_0 : i32, i32, i32
  }
}

</mosaic_0001>

<llo_original>
// kernel: tpu_custom_call.1
$region0: #{tpu_custom_call.1}
  #allocation0 [shape = 'u32[]', space=smem, size = 0x4, offset = 0x4, fixed_abs, tag = 'smem constant byte address 0x4 - core index']
  #allocation1 [shape = 'u32[72,128]{1,0:T(1,128)}', space=vmem, size = 0x9000, scoped, tag = 'internal scratch']
  #allocation2 [shape = 'f32[4,128]{1,0:T(4,128)}', space=vmem, size = 0x800, scoped, tag = 'scratch operand']
  #allocation3 [shape = 'f32[4,128]{1,0:T(4,128)}', space=vmem, size = 0x800, scoped, tag = 'scratch operand']
  %s0 = inlined_call_operand.hbm [shape: f32[2,4,256], index: 0, kind: input, shape index: {}]
  %s1 = inlined_call_operand.vmem [shape: f32[4,8], index: 1, kind: input, shape index: {}]
  %s2 = inlined_call_operand.vmem [shape: f32[4,1], index: 2, kind: input, shape index: {}]
  %s3 = inlined_call_operand.vmem [shape: f32[2,4,1], index: 3, kind: output, shape index: {}]
  %s4 = sld [smem:[#allocation0]]
  $region57: #{tpu_custom_call.1} parent=0
    _
  %s6 = ssub.s32 1, %s4
  %s7 = scalar_select 0, %s6, %s4
  $region1: #{tpu_custom_call.1} parent=0
    #allocation4 [shape = 'u8[8192]{0}', space=vmem, size = 0x2000, scoped, tag = 'input window, operand 0']
    #allocation5 [shape = 's32[2]{0}', space=sflag, size = 0x8, scoped, tag = 'scoped memory for tpu_custom_call.1']
    %8 = vsyncpa [#allocation5], 0
    %s9 = scalar_lea.sflag [#allocation5], 1
    %10 = vsyncpa %s9, 0
    loop: start=0, step=1, limit=4
    $region2: #{tpu_custom_call.1} parent=1 // loop_pre_header
      _
    $region3: #{tpu_custom_call.1} parent=1 // loop_header
      %s12 = sphi 0, %s16
      %p13 = scmp.ge.s32.totalorder %s12, 4
      %s19 = sphi 0, %s31
      %s20 = sphi 0, %s27
      %s21 = sphi 0, %s19
      %s22 = sphi 0, %s20
      %s23 = sphi 0, %s21
      %s24 = sphi 0, %s22
      %s36 = sphi 0, %s38
      %s39 = sphi 0, %s36
      %s40 = sphi 0, %s39
      %s56 = sphi 0, %s40
      %s60 = sphi 0, %s60
      %s62 = sphi 0, %s60
      %s63 = sphi 0, %s62
      %s77 = sphi 0, %s63
      %s81 = sphi 0, %s81
      %s83 = sphi 0, %s81
      %s84 = sphi 0, %s83
      %s98 = sphi 0, %s84
      %s104 = sphi 0, %s106
      %s107 = sphi 0, %s104
      %s108 = sphi 0, %s107
      %s124 = sphi 0, %s108
    $region4: #{tpu_custom_call.1} parent=1 // loop_header_branch
      %15 = sbr.rel (%p13) target = $region8
    $region5: #{tpu_custom_call.1} parent=1 // loop_body
      %s17 = ssub.s32 %s12, 1
      %s18 = ssub.s32 %s12, 2
      %s25 = sadd.s32 1, %s20
      %p26 = scmp.ge.s32.totalorder %s25, 1
      %s27 = scalar_select %p26, 0, %s25
      %s28 = sadd.s32 1, %s19
      %s29 = scalar_select %p26, %s28, %s19
      %p30 = scmp.ge.s32.totalorder %s29, 2
      %s31 = scalar_select %p30, 0, %s29
      %s32 = ssub.s32 %s19, %s31
      %s33 = ssub.s32 %s20, %s27
      %s34 = sor.u32 %s32, %s33
      %p35 = scmp.eq.s32.totalorder %s34, 0
      %s37 = sadd.s32 %s36, 1
      %s38 = scalar_select %p35, %s36, %s37
      %p41 = pneg %p35
      %p42 = scmp.eq.s32.totalorder %s12, 1
      %p43 = por %p41, %p42
      %p44 = scmp.ne.s32.totalorder %s36, %s39
      %p45 = scmp.eq.s32.totalorder %s12, 0
      %p46 = por %p44, %p45
      %p47 = scmp.ne.s32.totalorder %s36, %s39
      %p48 = scmp.eq.s32.totalorder %s17, 1
      %p49 = por %p47, %p48
      %p50 = scmp.ne.s32.totalorder %s39, %s40
      %p51 = scmp.eq.s32.totalorder %s17, 0
      %p52 = por %p50, %p51
      %p53 = scmp.ne.s32.totalorder %s39, %s40
      %p54 = scmp.eq.s32.totalorder %s18, 1
      %p55 = por %p53, %p54
      %p57 = scmp.ne.s32.totalorder %s40, %s56
      %p58 = scmp.eq.s32.totalorder %s18, 0
      %p59 = por %p57, %p58
      %s61 = sadd.s32 %s60, 1
      %p64 = scmp.eq.s32.totalorder %s12, 1
      %p65 = scmp.ne.s32.totalorder %s60, %s62
      %p66 = scmp.eq.s32.totalorder %s12, 0
      %p67 = por %p65, %p66
      %p68 = scmp.ne.s32.totalorder %s60, %s62
      %p69 = scmp.eq.s32.totalorder %s17, 1
      %p70 = por %p68, %p69
      %p71 = scmp.ne.s32.totalorder %s62, %s63
      %p72 = scmp.eq.s32.totalorder %s17, 0
      %p73 = por %p71, %p72
      %p74 = scmp.ne.s32.totalorder %s62, %s63
      %p75 = scmp.eq.s32.totalorder %s18, 1
      %p76 = por %p74, %p75
      %p78 = scmp.ne.s32.totalorder %s63, %s77
      %p79 = scmp.eq.s32.totalorder %s18, 0
      %p80 = por %p78, %p79
      %s82 = sadd.s32 %s81, 1
      %p85 = scmp.eq.s32.totalorder %s12, 1
      %p86 = scmp.ne.s32.totalorder %s81, %s83
      %p87 = scmp.eq.s32.totalorder %s12, 0
      %p88 = por %p86, %p87
      %p89 = scmp.ne.s32.totalorder %s81, %s83
      %p90 = scmp.eq.s32.totalorder %s17, 1
      %p91 = por %p89, %p90
      %p92 = scmp.ne.s32.totalorder %s83, %s84
      %p93 = scmp.eq.s32.totalorder %s17, 0
      %p94 = por %p92, %p93
      %p95 = scmp.ne.s32.totalorder %s83, %s84
      %p96 = scmp.eq.s32.totalorder %s18, 1
      %p97 = por %p95, %p96
      %p99 = scmp.ne.s32.totalorder %s84, %s98
      %p100 = scmp.eq.s32.totalorder %s18, 0
      %p101 = por %p99, %p100
      %s102 = ssub.s32 %s19, %s31
      %p103 = scmp.eq.s32.totalorder %s102, 0
      %s105 = sadd.s32 %s104, 1
      %s106 = scalar_select %p103, %s104, %s105
      %p109 = pneg %p103
      %p110 = scmp.eq.s32.totalorder %s12, 1
      %p111 = por %p109, %p110
      %p112 = scmp.ne.s32.totalorder %s104, %s107
      %p113 = scmp.eq.s32.totalorder %s12, 0
      %p114 = por %p112, %p113
      %p115 = scmp.ne.s32.totalorder %s104, %s107
      %p116 = scmp.eq.s32.totalorder %s17, 1
      %p117 = por %p115, %p116
      %p118 = scmp.ne.s32.totalorder %s107, %s108
      %p119 = scmp.eq.s32.totalorder %s17, 0
      %p120 = por %p118, %p119
      %p121 = scmp.ne.s32.totalorder %s107, %s108
      %p122 = scmp.eq.s32.totalorder %s18, 1
      %p123 = por %p121, %p122
      %p125 = scmp.ne.s32.totalorder %s108, %s124
      %p126 = scmp.eq.s32.totalorder %s18, 0
      %p127 = por %p125, %p126
      %p128 = scmp.le.s32.totalorder 1, %s12
      %p129 = scmp.lt.s32.totalorder %s12, 3
      %p130 = pnand %p128, %p129
      %p131 = pneg %p130
      // Predicated region
      $region9: #{tpu_custom_call.1} parent=5 // pred_check
        _
      $region10: #{tpu_custom_call.1} parent=5 // pred_check_branch
        %133 = sbr.rel (%p130) target = $region12
      $region11: #{tpu_custom_call.1} parent=5 // pred_region
        %s134 = ssub.s32 %s12, 1
        // Predicated region
        $region13: #{tpu_custom_call.1} parent=11 // pred_check
          %p135 = pneg %p73
        $region14: #{tpu_custom_call.1} parent=11 // pred_check_branch
          %137 = sbr.rel (%p135) target = $region16
        $region15: #{tpu_custom_call.1} parent=11 // pred_region
          _
        $region16: #{tpu_custom_call.1} parent=11 // pred_fallthru
          _
        // Predicated region
        $region17: #{tpu_custom_call.1} parent=11 // pred_check
          %p138 = pneg %p94
        $region18: #{tpu_custom_call.1} parent=11 // pred_check_branch
          %140 = sbr.rel (%p138) target = $region20
        $region19: #{tpu_custom_call.1} parent=11 // pred_region
          _
        $region20: #{tpu_custom_call.1} parent=11 // pred_fallthru
          _
      $region12: #{tpu_custom_call.1} parent=5 // pred_fallthru
        _
      %p141 = scmp.lt.s32.totalorder %s12, 2
      // Predicated region
      $region21: #{tpu_custom_call.1} parent=5 // pred_check
        %p142 = pneg %p141
      $region22: #{tpu_custom_call.1} parent=5 // pred_check_branch
        %144 = sbr.rel (%p142) target = $region24
      $region23: #{tpu_custom_call.1} parent=5 // pred_region
        // Predicated region
        $region25: #{tpu_custom_call.1} parent=23 // pred_check
          %p145 = pneg %p46
        $region26: #{tpu_custom_call.1} parent=23 // pred_check_branch
          %147 = sbr.rel (%p145) target = $region28
        $region27: #{tpu_custom_call.1} parent=23 // pred_region
          %s148 = sand.u32 %s36, 1
          %s149 = scalar_lea.sflag [#allocation5], %s148
          %s150 = sand.u32 %s36, 1
          %s151 = smul.addr %s150, 8
          %s152 = scalar_lea.vmem [#allocation4], %s151
          %s153 = smul.u32 2, %s20
          %155 = vsyncadd %s149, 0
          %s156 = smul.addr %s19, 2
          %s157 = sadd.s32 %s153, %s156
          %s158 = smul.addr %s157, 4
          %s159 = scalar_lea.hbm %s0, %s158
          %s161 = sshll.u32 %s159, 4
          %s162 = int_to_ptr.hbm [resolvable:$true] %s161
          %s163 = sshll.u32 %s152, 4
          %s164 = int_to_ptr.vmem [resolvable:$true] %s163
          %166 = dma.hbm_to_vmem [thread:$0]  %s162, 128, %s164, %s149
        $region28: #{tpu_custom_call.1} parent=23 // pred_fallthru
          _
      $region24: #{tpu_custom_call.1} parent=5 // pred_fallthru
        _
      %p167 = scmp.le.s32.totalorder 1, %s12
      %p168 = scmp.lt.s32.totalorder %s12, 3
      %p169 = pnand %p167, %p168
      %p170 = pneg %p169
      // Predicated region
      $region29: #{tpu_custom_call.1} parent=5 // pred_check
        _
      $region30: #{tpu_custom_call.1} parent=5 // pred_check_branch
        %172 = sbr.rel (%p169) target = $region32
      $region31: #{tpu_custom_call.1} parent=5 // pred_region
        %s173 = ssub.s32 %s12, 1
        %s174 = sand.u32 %s39, 1
        %s175 = scalar_lea.sflag [#allocation5], %s174
        %s176 = sand.u32 %s39, 1
        %s177 = smul.addr %s176, 8
        %s178 = scalar_lea.vmem [#allocation4], %s177
        // Predicated region
        $region33: #{tpu_custom_call.1} parent=31 // pred_check
          %p179 = pneg %p52
        $region34: #{tpu_custom_call.1} parent=31 // pred_check_branch
          %181 = sbr.rel (%p179) target = $region36
        $region35: #{tpu_custom_call.1} parent=31 // pred_region
          %183 = dma.done %s175, 128
        $region36: #{tpu_custom_call.1} parent=31 // pred_fallthru
          _
        %s184 = sand.u32 %s39, 1
        %s185 = scalar_lea.sflag [#allocation5], %s184
        %s186 = sand.u32 %s39, 1
        %s187 = smul.addr %s186, 8
        %s188 = scalar_lea.vmem [#allocation4], %s187
        %p189 = pneg %p52
        %p190 = pneg %p49
        %p191 = pneg %p73
        %p192 = pneg %p70
        %p193 = pneg %p94
        %p194 = pneg %p91
        %p195 = pneg %p120
        %p196 = pneg %p117
        %p197 = scmp.lt.s32.totalorder %s21, 1
        %s198 = scalar_select %p197, %s21, 1
        %s199 = smul.addr %s198, 4
        %s200 = scalar_lea.vmem %s3, %s199
        %s201 = smul.u32 2, %s22
        %p202 = scmp.lt.s32.totalorder %s21, 1
        %s203 = scalar_select %p202, %s21, 1
        %s204 = smul.addr %s203, 4
        %s205 = scalar_lea.vmem %s3, %s204
        %p206 = scmp.eq.s32.totalorder %s22, 0
        // Predicated region
        $region37: #{tpu_custom_call.1} parent=31 // pred_check
          %p207 = pneg %p206
        $region38: #{tpu_custom_call.1} parent=31 // pred_check_branch
          %209 = sbr.rel (%p207) target = $region40
        $region39: #{tpu_custom_call.1} parent=31 // pred_region
          %210 = vst [vmem:[#allocation2] sm:$0xf] 0.0
          %211 = vst [vmem:[#allocation3] sm:$0xf] -inf
        $region40: #{tpu_custom_call.1} parent=31 // pred_fallthru
          _
        %v212 = vld [vmem:[%s178] sm:$0xf]
        %v213 = vld [vmem:[#allocation2] sm:$0xf]
        %v214 = vadd.f32 %v213, %v212
        %215 = vst [vmem:[#allocation2] sm:$0xf] %v214
        %v216 = vld [vmem:[#allocation3] sm:$0xf]
        %v217 = vmax.f32 %v216, %v212
        %218 = vst [vmem:[#allocation3] sm:$0xf] %v217
        %v219 = vld [vmem:[%s178 + $0x4] sm:$0xf]
        %v220 = vld [vmem:[#allocation2] sm:$0xf]
        %v221 = vadd.f32 %v220, %v219
        %222 = vst [vmem:[#allocation2] sm:$0xf] %v221
        %v223 = vld [vmem:[#allocation3] sm:$0xf]
        %v224 = vmax.f32 %v223, %v219
        %225 = vst [vmem:[#allocation3] sm:$0xf] %v224
        // Predicated region
        $region41: #{tpu_custom_call.1} parent=31 // pred_check
          %p226 = pneg %p206
        $region42: #{tpu_custom_call.1} parent=31 // pred_check_branch
          %228 = sbr.rel (%p226) target = $region44
        $region43: #{tpu_custom_call.1} parent=31 // pred_region
          %v229 = vld [vmem:[#allocation2] sm:$0xf]
          %vm230 = vcmask 1043456
          %v231 = vsel %vm230, %v229, 0.0
          %232 = vadd.xlane.f32.xlu0 %v231
          %v233 = vpop.xlane.xlu0 %232
          %v234 = vmul.f32 %v233, 0.00390625
          %v235 = vld [vmem:[#allocation3] sm:$0xf]
          %v236 = vsel %vm230, %v235, -inf
          %237 = vmax.xlane.f32.xlu0 %v236
          %v238 = vpop.xlane.xlu0 %237
          %v240 = vrot.slane %v238, 4
          %v242 = vsel %vm230, %v234, %v240
          %v243 = vld [vmem:[%s1] sm:$0xf]
          %v244 = vld [vmem:[%s2] sm:$0xf]
          %vm245 = vcmask 64512
          %v247 = vsel %vm245, %v243, 0
          %249 = vmatpush.msra.mxu0 0.0
          %250 = vmatpush.msra.mxu0 0.0
          %251 = vmatpush.msra.mxu0 0.0
          %252 = vmatpush.msra.mxu0 0.0
          %253 = vmatpush.msra.mxu0 0.0
          %254 = vmatpush.msra.mxu0 0.0
          %255 = vmatpush.msra.mxu0 0.0
          %256 = vmatpush.msra.mxu0 0.0
          %257 = vmatpush.msra.mxu0 0.0
          %258 = vmatpush.msra.mxu0 0.0
          %259 = vmatpush.msra.mxu0 0.0
          %260 = vmatpush.msra.mxu0 0.0
          %261 = vmatpush.msra.mxu0 0.0
          %262 = vmatpush.msra.mxu0 0.0
          %263 = vmatpush.msra.mxu0 0.0
          %264 = vmatpush.msra.mxu0 %v242
          %265 = vmatmul.f32.gmra.mxu0 %v247
          %v266 = vpop.f32.mrf.mxu0
          %v267 = vadd.f32 %v244, %v266
          %268 = vdwg.mxu0
          %vm269 = vcmask 3072
          %270 = vst.msk [vmem:[%s205] sm:$0xf] %vm269, %v267
        $region44: #{tpu_custom_call.1} parent=31 // pred_fallthru
          _
        %p271 = scmp.lt.s32.totalorder %s21, 1
        %s272 = scalar_select %p271, %s21, 1
        %s273 = smul.addr %s272, 4
        %s274 = scalar_lea.vmem %s3, %s273
        // Predicated region
        $region45: #{tpu_custom_call.1} parent=31 // pred_check
          %p275 = pneg %p117
        $region46: #{tpu_custom_call.1} parent=31 // pred_check_branch
          %277 = sbr.rel (%p275) target = $region48
        $region47: #{tpu_custom_call.1} parent=31 // pred_region
          _
        $region48: #{tpu_custom_call.1} parent=31 // pred_fallthru
          _
      $region32: #{tpu_custom_call.1} parent=5 // pred_fallthru
        _
      %p278 = scmp.le.s32.totalorder 2, %s12
      // Predicated region
      $region49: #{tpu_custom_call.1} parent=5 // pred_check
        %p279 = pneg %p278
      $region50: #{tpu_custom_call.1} parent=5 // pred_check_branch
        %281 = sbr.rel (%p279) target = $region52
      $region51: #{tpu_custom_call.1} parent=5 // pred_region
        %s282 = ssub.s32 %s12, 2
        // Predicated region
        $region53: #{tpu_custom_call.1} parent=51 // pred_check
          %p283 = pneg %p123
        $region54: #{tpu_custom_call.1} parent=51 // pred_check_branch
          %285 = sbr.rel (%p283) target = $region56
        $region55: #{tpu_custom_call.1} parent=51 // pred_region
          %p286 = scmp.lt.s32.totalorder %s23, 1
          %s287 = scalar_select %p286, %s23, 1
          %s288 = smul.addr %s287, 4
          %s289 = scalar_lea.vmem %s3, %s288
        $region56: #{tpu_custom_call.1} parent=51 // pred_fallthru
          _
      $region52: #{tpu_custom_call.1} parent=5 // pred_fallthru
        _
    $region6: #{tpu_custom_call.1} parent=1 // loop_footer
      %s16 = sadd.s32 1, %s12
    $region7: #{tpu_custom_call.1} parent=1 // loop_footer_branch
      %11 = sbr.rel target = $region3
    $region8: #{tpu_custom_call.1} parent=1 // loop_exit
      _
    %290 = vsyncpa [#allocation5], 1
    %s291 = scalar_lea.sflag [#allocation5], 1
    %292 = vsyncpa %s291, 1

// kernel: tpu_custom_call.1
$region0: #{tpu_custom_call.1}
  #allocation0 [shape = 'u32[]', space=smem, size = 0x4, offset = 0x4, fixed_abs, tag = 'smem constant byte address 0x4 - core index']
  #allocation1 [shape = 'u32[72,128]{1,0:T(1,128)}', space=vmem, size = 0x9000, scoped, tag = 'internal scratch']
  #allocation2 [shape = 'f32[4,128]{1,0:T(4,128)}', space=vmem, size = 0x800, scoped, tag = 'scratch operand']
  #allocation3 [shape = 'f32[4,128]{1,0:T(4,128)}', space=vmem, size = 0x800, scoped, tag = 'scratch operand']
  %s0 = inlined_call_operand.hbm [shape: f32[2,4,256], index: 0, kind: input, shape index: {}]
  %s1 = inlined_call_operand.vmem [shape: f32[4,8], index: 1, kind: input, shape index: {}]
  %s2 = inlined_call_operand.vmem [shape: f32[4,1], index: 2, kind: input, shape index: {}]
  %s3 = inlined_call_operand.vmem [shape: f32[2,4,1], index: 3, kind: output, shape index: {}]
  %s4 = sld [smem:[#allocation0]]
  $region57: #{tpu_custom_call.1} parent=0
    _
  %s6 = ssub.s32 1, %s4
  %s7 = scalar_select 0, %s6, %s4
  $region1: #{tpu_custom_call.1} parent=0
    #allocation4 [shape = 'u8[8192]{0}', space=vmem, size = 0x2000, scoped, tag = 'input window, operand 0']
    #allocation5 [shape = 's32[2]{0}', space=sflag, size = 0x8, scoped, tag = 'scoped memory for tpu_custom_call.1']
    %8 = vsyncpa [#allocation5], 0
    %s9 = scalar_lea.sflag [#allocation5], 1
    %10 = vsyncpa %s9, 0
    loop: start=0, step=1, limit=4
    $region2: #{tpu_custom_call.1} parent=1 // loop_pre_header
      _
    $region3: #{tpu_custom_call.1} parent=1 // loop_header
      %s12 = sphi 0, %s16
      %p13 = scmp.ge.s32.totalorder %s12, 4
      %s19 = sphi 0, %s31
      %s20 = sphi 0, %s27
      %s21 = sphi 0, %s19
      %s22 = sphi 0, %s20
      %s23 = sphi 0, %s21
      %s24 = sphi 0, %s22
      %s36 = sphi 0, %s38
      %s39 = sphi 0, %s36
      %s40 = sphi 0, %s39
      %s56 = sphi 0, %s40
      %s60 = sphi 0, %s60
      %s62 = sphi 0, %s60
      %s63 = sphi 0, %s62
      %s77 = sphi 0, %s63
      %s81 = sphi 0, %s81
      %s83 = sphi 0, %s81
      %s84 = sphi 0, %s83
      %s98 = sphi 0, %s84
      %s104 = sphi 0, %s106
      %s107 = sphi 0, %s104
      %s108 = sphi 0, %s107
      %s124 = sphi 0, %s108
    $region4: #{tpu_custom_call.1} parent=1 // loop_header_branch
      %15 = sbr.rel (%p13) target = $region8
    $region5: #{tpu_custom_call.1} parent=1 // loop_body
      %s17 = ssub.s32 %s12, 1
      %s18 = ssub.s32 %s12, 2
      %s25 = sadd.s32 1, %s20
      %p26 = scmp.ge.s32.totalorder %s25, 1
      %s27 = scalar_select %p26, 0, %s25
      %s28 = sadd.s32 1, %s19
      %s29 = scalar_select %p26, %s28, %s19
      %p30 = scmp.ge.s32.totalorder %s29, 2
      %s31 = scalar_select %p30, 0, %s29
      %s32 = ssub.s32 %s19, %s31
      %s33 = ssub.s32 %s20, %s27
      %s34 = sor.u32 %s32, %s33
      %p35 = scmp.eq.s32.totalorder %s34, 0
      %s37 = sadd.s32 %s36, 1
      %s38 = scalar_select %p35, %s36, %s37
      %p41 = pneg %p35
      %p42 = scmp.eq.s32.totalorder %s12, 1
      %p43 = por %p41, %p42
      %p44 = scmp.ne.s32.totalorder %s36, %s39
      %p45 = scmp.eq.s32.totalorder %s12, 0
      %p46 = por %p44, %p45
      %p47 = scmp.ne.s32.totalorder %s36, %s39
      %p48 = scmp.eq.s32.totalorder %s17, 1
      %p49 = por %p47, %p48
      %p50 = scmp.ne.s32.totalorder %s39, %s40
      %p51 = scmp.eq.s32.totalorder %s17, 0
      %p52 = por %p50, %p51
      %p53 = scmp.ne.s32.totalorder %s39, %s40
      %p54 = scmp.eq.s32.totalorder %s18, 1
      %p55 = por %p53, %p54
      %p57 = scmp.ne.s32.totalorder %s40, %s56
      %p58 = scmp.eq.s32.totalorder %s18, 0
      %p59 = por %p57, %p58
      %s61 = sadd.s32 %s60, 1
      %p64 = scmp.eq.s32.totalorder %s12, 1
      %p65 = scmp.ne.s32.totalorder %s60, %s62
      %p66 = scmp.eq.s32.totalorder %s12, 0
      %p67 = por %p65, %p66
      %p68 = scmp.ne.s32.totalorder %s60, %s62
      %p69 = scmp.eq.s32.totalorder %s17, 1
      %p70 = por %p68, %p69
      %p71 = scmp.ne.s32.totalorder %s62, %s63
      %p72 = scmp.eq.s32.totalorder %s17, 0
      %p73 = por %p71, %p72
      %p74 = scmp.ne.s32.totalorder %s62, %s63
      %p75 = scmp.eq.s32.totalorder %s18, 1
      %p76 = por %p74, %p75
      %p78 = scmp.ne.s32.totalorder %s63, %s77
      %p79 = scmp.eq.s32.totalorder %s18, 0
      %p80 = por %p78, %p79
      %s82 = sadd.s32 %s81, 1
      %p85 = scmp.eq.s32.totalorder %s12, 1
      %p86 = scmp.ne.s32.totalorder %s81, %s83
      %p87 = scmp.eq.s32.totalorder %s12, 0
      %p88 = por %p86, %p87
      %p89 = scmp.ne.s32.totalorder %s81, %s83
      %p90 = scmp.eq.s32.totalorder %s17, 1
      %p91 = por %p89, %p90
      %p92 = scmp.ne.s32.totalorder %s83, %s84
      %p93 = scmp.eq.s32.totalorder %s17, 0
      %p94 = por %p92, %p93
      %p95 = scmp.ne.s32.totalorder %s83, %s84
      %p96 = scmp.eq.s32.totalorder %s18, 1
      %p97 = por %p95, %p96
      %p99 = scmp.ne.s32.totalorder %s84, %s98
      %p100 = scmp.eq.s32.totalorder %s18, 0
      %p101 = por %p99, %p100
      %s102 = ssub.s32 %s19, %s31
      %p103 = scmp.eq.s32.totalorder %s102, 0
      %s105 = sadd.s32 %s104, 1
      %s106 = scalar_select %p103, %s104, %s105
      %p109 = pneg %p103
      %p110 = scmp.eq.s32.totalorder %s12, 1
      %p111 = por %p109, %p110
      %p112 = scmp.ne.s32.totalorder %s104, %s107
      %p113 = scmp.eq.s32.totalorder %s12, 0
      %p114 = por %p112, %p113
      %p115 = scmp.ne.s32.totalorder %s104, %s107
      %p116 = scmp.eq.s32.totalorder %s17, 1
      %p117 = por %p115, %p116
      %p118 = scmp.ne.s32.totalorder %s107, %s108
      %p119 = scmp.eq.s32.totalorder %s17, 0
      %p120 = por %p118, %p119
      %p121 = scmp.ne.s32.totalorder %s107, %s108
      %p122 = scmp.eq.s32.totalorder %s18, 1
      %p123 = por %p121, %p122
      %p125 = scmp.ne.s32.totalorder %s108, %s124
      %p126 = scmp.eq.s32.totalorder %s18, 0
      %p127 = por %p125, %p126
      %p128 = scmp.le.s32.totalorder 1, %s12
      %p129 = scmp.lt.s32.totalorder %s12, 3
      %p130 = pnand %p128, %p129
      %p131 = pneg %p130
      // Predicated region
      $region9: #{tpu_custom_call.1} parent=5 // pred_check
        _
      $region10: #{tpu_custom_call.1} parent=5 // pred_check_branch
        %133 = sbr.rel (%p130) target = $region12
      $region11: #{tpu_custom_call.1} parent=5 // pred_region
        %s134 = ssub.s32 %s12, 1
        // Predicated region
        $region13: #{tpu_custom_call.1} parent=11 // pred_check
          %p135 = pneg %p73
        $region14: #{tpu_custom_call.1} parent=11 // pred_check_branch
          %137 = sbr.rel (%p135) target = $region16
        $region15: #{tpu_custom_call.1} parent=11 // pred_region
          _
        $region16: #{tpu_custom_call.1} parent=11 // pred_fallthru
          _
        // Predicated region
        $region17: #{tpu_custom_call.1} parent=11 // pred_check
          %p138 = pneg %p94
        $region18: #{tpu_custom_call.1} parent=11 // pred_check_branch
          %140 = sbr.rel (%p138) target = $region20
        $region19: #{tpu_custom_call.1} parent=11 // pred_region
          _
        $region20: #{tpu_custom_call.1} parent=11 // pred_fallthru
          _
      $region12: #{tpu_custom_call.1} parent=5 // pred_fallthru
        _
      %p141 = scmp.lt.s32.totalorder %s12, 2
      // Predicated region
      $region21: #{tpu_custom_call.1} parent=5 // pred_check
        %p142 = pneg %p141
      $region22: #{tpu_custom_call.1} parent=5 // pred_check_branch
        %144 = sbr.rel (%p142) target = $region24
      $region23: #{tpu_custom_call.1} parent=5 // pred_region
        // Predicated region
        $region25: #{tpu_custom_call.1} parent=23 // pred_check
          %p145 = pneg %p46
        $region26: #{tpu_custom_call.1} parent=23 // pred_check_branch
          %147 = sbr.rel (%p145) target = $region28
        $region27: #{tpu_custom_call.1} parent=23 // pred_region
          %s148 = sand.u32 %s36, 1
          %s149 = scalar_lea.sflag [#allocation5], %s148
          %s150 = sand.u32 %s36, 1
          %s151 = smul.addr %s150, 8
          %s152 = scalar_lea.vmem [#allocation4], %s151
          %s153 = smul.u32 2, %s20
          %155 = vsyncadd %s149, 0
          %s156 = smul.addr %s19, 2
          %s157 = sadd.s32 %s153, %s156
          %s158 = smul.addr %s157, 4
          %s159 = scalar_lea.hbm %s0, %s158
          %s161 = sshll.u32 %s159, 4
          %s162 = int_to_ptr.hbm [resolvable:$true] %s161
          %s163 = sshll.u32 %s152, 4
          %s164 = int_to_ptr.vmem [resolvable:$true] %s163
          %166 = dma.hbm_to_vmem [thread:$0]  %s162, 128, %s164, %s149
        $region28: #{tpu_custom_call.1} parent=23 // pred_fallthru
          _
      $region24: #{tpu_custom_call.1} parent=5 // pred_fallthru
        _
      %p167 = scmp.le.s32.totalorder 1, %s12
      %p168 = scmp.lt.s32.totalorder %s12, 3
      %p169 = pnand %p167, %p168
      %p170 = pneg %p169
      // Predicated region
      $region29: #{tpu_custom_call.1} parent=5 // pred_check
        _
      $region30: #{tpu_custom_call.1} parent=5 // pred_check_branch
        %172 = sbr.rel (%p169) target = $region32
      $region31: #{tpu_custom_call.1} parent=5 // pred_region
        %s173 = ssub.s32 %s12, 1
        %s174 = sand.u32 %s39, 1
        %s175 = scalar_lea.sflag [#allocation5], %s174
        %s176 = sand.u32 %s39, 1
        %s177 = smul.addr %s176, 8
        %s178 = scalar_lea.vmem [#allocation4], %s177
        // Predicated region
        $region33: #{tpu_custom_call.1} parent=31 // pred_check
          %p179 = pneg %p52
        $region34: #{tpu_custom_call.1} parent=31 // pred_check_branch
          %181 = sbr.rel (%p179) target = $region36
        $region35: #{tpu_custom_call.1} parent=31 // pred_region
          %183 = dma.done %s175, 128
        $region36: #{tpu_custom_call.1} parent=31 // pred_fallthru
          _
        %s184 = sand.u32 %s39, 1
        %s185 = scalar_lea.sflag [#allocation5], %s184
        %s186 = sand.u32 %s39, 1
        %s187 = smul.addr %s186, 8
        %s188 = scalar_lea.vmem [#allocation4], %s187
        %p189 = pneg %p52
        %p190 = pneg %p49
        %p191 = pneg %p73
        %p192 = pneg %p70
        %p193 = pneg %p94
        %p194 = pneg %p91
        %p195 = pneg %p120
        %p196 = pneg %p117
        %p197 = scmp.lt.s32.totalorder %s21, 1
        %s198 = scalar_select %p197, %s21, 1
        %s199 = smul.addr %s198, 4
        %s200 = scalar_lea.vmem %s3, %s199
        %s201 = smul.u32 2, %s22
        %p202 = scmp.lt.s32.totalorder %s21, 1
        %s203 = scalar_select %p202, %s21, 1
        %s204 = smul.addr %s203, 4
        %s205 = scalar_lea.vmem %s3, %s204
        %p206 = scmp.eq.s32.totalorder %s22, 0
        // Predicated region
        $region37: #{tpu_custom_call.1} parent=31 // pred_check
          %p207 = pneg %p206
        $region38: #{tpu_custom_call.1} parent=31 // pred_check_branch
          %209 = sbr.rel (%p207) target = $region40
        $region39: #{tpu_custom_call.1} parent=31 // pred_region
          %210 = vst [vmem:[#allocation2] sm:$0xf] 0.0
          %211 = vst [vmem:[#allocation3] sm:$0xf] -inf
        $region40: #{tpu_custom_call.1} parent=31 // pred_fallthru
          _
        %v212 = vld [vmem:[%s178] sm:$0xf]
        %v213 = vld [vmem:[#allocation2] sm:$0xf]
        %v214 = vadd.f32 %v213, %v212
        %215 = vst [vmem:[#allocation2] sm:$0xf] %v214
        %v216 = vld [vmem:[#allocation3] sm:$0xf]
        %v217 = vmax.f32 %v216, %v212
        %218 = vst [vmem:[#allocation3] sm:$0xf] %v217
        %v219 = vld [vmem:[%s178 + $0x4] sm:$0xf]
        %v220 = vld [vmem:[#allocation2] sm:$0xf]
        %v221 = vadd.f32 %v220, %v219
        %222 = vst [vmem:[#allocation2] sm:$0xf] %v221
        %v223 = vld [vmem:[#allocation3] sm:$0xf]
        %v224 = vmax.f32 %v223, %v219
        %225 = vst [vmem:[#allocation3] sm:$0xf] %v224
        // Predicated region
        $region41: #{tpu_custom_call.1} parent=31 // pred_check
          %p226 = pneg %p206
        $region42: #{tpu_custom_call.1} parent=31 // pred_check_branch
          %228 = sbr.rel (%p226) target = $region44
        $region43: #{tpu_custom_call.1} parent=31 // pred_region
          %v229 = vld [vmem:[#allocation2] sm:$0xf]
          %vm230 = vcmask 1043456
          %v231 = vsel %vm230, %v229, 0.0
          %232 = vadd.xlane.f32.xlu0 %v231
          %v233 = vpop.xlane.xlu0 %232
          %v234 = vmul.f32 %v233, 0.00390625
          %v235 = vld [vmem:[#allocation3] sm:$0xf]
          %v236 = vsel %vm230, %v235, -inf
          %237 = vmax.xlane.f32.xlu0 %v236
          %v238 = vpop.xlane.xlu0 %237
          %v240 = vrot.slane %v238, 4
          %v242 = vsel %vm230, %v234, %v240
          %v243 = vld [vmem:[%s1] sm:$0xf]
          %v244 = vld [vmem:[%s2] sm:$0xf]
          %vm245 = vcmask 64512
          %v247 = vsel %vm245, %v243, 0
          %249 = vmatpush.msra.mxu0 0.0
          %250 = vmatpush.msra.mxu0 0.0
          %251 = vmatpush.msra.mxu0 0.0
          %252 = vmatpush.msra.mxu0 0.0
          %253 = vmatpush.msra.mxu0 0.0
          %254 = vmatpush.msra.mxu0 0.0
          %255 = vmatpush.msra.mxu0 0.0
          %256 = vmatpush.msra.mxu0 0.0
          %257 = vmatpush.msra.mxu0 0.0
          %258 = vmatpush.msra.mxu0 0.0
          %259 = vmatpush.msra.mxu0 0.0
          %260 = vmatpush.msra.mxu0 0.0
          %261 = vmatpush.msra.mxu0 0.0
          %262 = vmatpush.msra.mxu0 0.0
          %263 = vmatpush.msra.mxu0 0.0
          %264 = vmatpush.msra.mxu0 %v242
          %265 = vmatmul.f32.gmra.mxu0 %v247
          %v266 = vpop.f32.mrf.mxu0
          %v267 = vadd.f32 %v244, %v266
          %268 = vdwg.mxu0
          %vm269 = vcmask 3072
          %270 = vst.msk [vmem:[%s205] sm:$0xf] %vm269, %v267
        $region44: #{tpu_custom_call.1} parent=31 // pred_fallthru
          _
        %p271 = scmp.lt.s32.totalorder %s21, 1
        %s272 = scalar_select %p271, %s21, 1
        %s273 = smul.addr %s272, 4
        %s274 = scalar_lea.vmem %s3, %s273
        // Predicated region
        $region45: #{tpu_custom_call.1} parent=31 // pred_check
          %p275 = pneg %p117
        $region46: #{tpu_custom_call.1} parent=31 // pred_check_branch
          %277 = sbr.rel (%p275) target = $region48
        $region47: #{tpu_custom_call.1} parent=31 // pred_region
          _
        $region48: #{tpu_custom_call.1} parent=31 // pred_fallthru
          _
      $region32: #{tpu_custom_call.1} parent=5 // pred_fallthru
        _
      %p278 = scmp.le.s32.totalorder 2, %s12
      // Predicated region
      $region49: #{tpu_custom_call.1} parent=5 // pred_check
        %p279 = pneg %p278
      $region50: #{tpu_custom_call.1} parent=5 // pred_check_branch
        %281 = sbr.rel (%p279) target = $region52
      $region51: #{tpu_custom_call.1} parent=5 // pred_region
        %s282 = ssub.s32 %s12, 2
        // Predicated region
        $region53: #{tpu_custom_call.1} parent=51 // pred_check
          %p283 = pneg %p123
        $region54: #{tpu_custom_call.1} parent=51 // pred_check_branch
          %285 = sbr.rel (%p283) target = $region56
        $region55: #{tpu_custom_call.1} parent=51 // pred_region
          %p286 = scmp.lt.s32.totalorder %s23, 1
          %s287 = scalar_select %p286, %s23, 1
          %s288 = smul.addr %s287, 4
          %s289 = scalar_lea.vmem %s3, %s288
        $region56: #{tpu_custom_call.1} parent=51 // pred_fallthru
          _
      $region52: #{tpu_custom_call.1} parent=5 // pred_fallthru
        _
    $region6: #{tpu_custom_call.1} parent=1 // loop_footer
      %s16 = sadd.s32 1, %s12
    $region7: #{tpu_custom_call.1} parent=1 // loop_footer_branch
      %11 = sbr.rel target = $region3
    $region8: #{tpu_custom_call.1} parent=1 // loop_exit
      _
    %290 = vsyncpa [#allocation5], 1
    %s291 = scalar_lea.sflag [#allocation5], 1
    %292 = vsyncpa %s291, 1

</llo_original>
